<compile_context>
chip_gen: v6e
topology: v6e:2x2x1
jax: 0.10.0
libtpu: 0.0.40
codegen_flags: <defaults>
</compile_context>

<pallas_src>
import functools

import jax
import jax.numpy as jnp
from jax import lax
from jax.experimental import pallas as pl
from jax.experimental.pallas import tpu as pltpu

BN_EPS = 1e-5
LANES = 128

# CompilerParams was renamed from TPUCompilerParams in newer JAX; support both.
_CompilerParams = getattr(pltpu, "CompilerParams", getattr(pltpu, "TPUCompilerParams", None))


def _round_up(x, m):
    return (x + m - 1) // m * m


# --------------------------------------------------------------------------- kernel
def _conv_bn_kernel(*refs, relu, has_res):
    """One M-tile of: (im2col patches @ scale-folded weights) + shift
    [+ residual] [+ ReLU].  Matmul in bf16 on the MXU, f32 accumulation/epilogue."""
    if has_res:
        p_ref, w_ref, b_ref, r_ref, o_ref = refs
    else:
        p_ref, w_ref, b_ref, o_ref = refs
        r_ref = None
    acc = jnp.dot(p_ref[...], w_ref[...], preferred_element_type=jnp.float32)
    acc = acc + b_ref[...]                      # BN shift (scale already in weights)
    if has_res:
        acc = acc + r_ref[...]                  # fused shortcut add
    if relu:
        acc = jnp.maximum(acc, 0.0)
    o_ref[...] = acc.astype(o_ref.dtype)


# --------------------------------------------------------------------------- glue
def _im2col(x, stride):
    """x: (N, H, W, C) NHWC, 3x3 kernel, padding=1 -> (N*Ho*Wo, 9*C)."""
    n, h, w, c = x.shape
    xp = jnp.pad(x, ((0, 0), (1, 1), (1, 1), (0, 0)))
    ho = (h + 2 - 3) // stride + 1
    wo = (w + 2 - 3) // stride + 1
    cols = []
    for i in range(3):
        for j in range(3):
            cols.append(xp[:, i:i + stride * ho:stride, j:j + stride * wo:stride, :])
    patches = jnp.stack(cols, axis=3)           # (N, Ho, Wo, 9, C)
    return patches.reshape(n * ho * wo, 9 * c), ho, wo


def prepare_conv_bn(w_oihw, bn):
    """One-time param prep: fold BN scale into conv weights, pad to MXU-friendly
    shapes (K -> mult of 16, Cout -> 128 lanes), cast weights to bf16."""
    cout, cin = w_oihw.shape[0], w_oihw.shape[1]
    k = 9 * cin
    kp = _round_up(k, 16)            # bf16 sublane packing
    cp = _round_up(cout, LANES)      # lane-dense output (no masked partial stores)
    inv_std = 1.0 / jnp.sqrt(bn["var"] + BN_EPS)
    scale = bn["gamma"] * inv_std                                   # (cout,)
    shift = bn["beta"] - bn["mean"] * scale                         # (cout,)
    # OIHW -> (kh, kw, cin, cout) matching the im2col (tap, cin) ordering.
    w_mat = jnp.transpose(w_oihw, (2, 3, 1, 0)).reshape(k, cout) * scale[None, :]
    w_pad = jnp.pad(w_mat, ((0, kp - k), (0, cp - cout))).astype(jnp.bfloat16)
    shift_pad = jnp.pad(shift, (0, cp - cout)).reshape(1, cp).astype(jnp.float32)
    return dict(w=w_pad, shift=shift_pad, cin=cin, cout=cout, k=k, kp=kp, cp=cp)


def conv3x3_bn(x, prep, stride, residual=None, relu=True, tile_m=256):
    """3x3 conv (pad=1, no bias) + folded BN (+residual) (+ReLU) as an M-tiled
    Pallas matmul with lane-dense, channel-padded output."""
    n = x.shape[0]
    cout, k, kp, cp = prep["cout"], prep["k"], prep["kp"], prep["cp"]
    assert x.shape[-1] == prep["cin"]

    # bf16 patches: halves HBM bytes of the im2col tensor and feeds the bf16 MXU.
    patches, ho, wo = _im2col(x.astype(jnp.bfloat16), stride)
    m = n * ho * wo
    tm = min(tile_m, _round_up(m, 16))
    mp = _round_up(m, tm)
    patches = jnp.pad(patches, ((0, mp - m), (0, kp - k)))

    operands = [patches, prep["w"], prep["shift"]]
    in_specs = [
        pl.BlockSpec((tm, kp), lambda i: (i, 0)),      # M-tiled activations
        pl.BlockSpec((kp, cp), lambda i: (0, 0)),      # weights stay VMEM-resident
        pl.BlockSpec((1, cp), lambda i: (0, 0)),       # BN shift, VMEM-resident
    ]
    has_res = residual is not None
    if has_res:
        r = residual.reshape(m, cout).astype(jnp.float32)
        r = jnp.pad(r, ((0, mp - m), (0, cp - cout)))
        operands.append(r)
        in_specs.append(pl.BlockSpec((tm, cp), lambda i: (i, 0)))

    out = pl.pallas_call(
        functools.partial(_conv_bn_kernel, relu=relu, has_res=has_res),
        out_shape=jax.ShapeDtypeStruct((mp, cp), jnp.float32),
        grid=(mp // tm,),
        in_specs=in_specs,
        out_specs=pl.BlockSpec((tm, cp), lambda i: (i, 0)),
        compiler_params=_CompilerParams(
            dimension_semantics=("parallel",),          # shards M tiles across TCs (v7x)
            vmem_limit_bytes=32 * 1024 * 1024,
        ),
    )(*operands)
    return out[:m, :cout].reshape(n, ho, wo, cout)


def _shortcut_a(x, planes):
    """LambdaLayer option 'A': spatial subsample by 2 and zero-pad channels (NHWC)."""
    x = x[:, ::2, ::2, :]
    pad = planes // 4
    return jnp.pad(x, ((0, 0), (0, 0), (0, 0), (pad, pad)))


def basic_block(x_nhwc, blk):
    """BasicBlock.forward: relu(bn1(conv1(x))); bn2(conv2(.)) += shortcut(x); relu."""
    out = conv3x3_bn(x_nhwc, blk["prep1"], stride=blk["stride"], relu=True)
    sc = x_nhwc
    if blk["stride"] != 1 or blk["in_planes"] != blk["planes"]:
        sc = _shortcut_a(x_nhwc, blk["planes"])
    # residual add + final ReLU are fused into conv2's kernel epilogue
    return conv3x3_bn(out, blk["prep2"], stride=1, residual=sc, relu=True)


def basic_block_nchw(x_nchw, blk):
    x = jnp.transpose(x_nchw, (0, 2, 3, 1))            # NCHW -> NHWC
    out = basic_block(x, blk)
    return jnp.transpose(out, (0, 3, 1, 2))            # NHWC -> NCHW


# --------------------------------------------------------------------------- params
def init_basic_block(key, in_planes, planes, stride):
    def bn_params(kk, c):
        ka, kb, kc, kd = jax.random.split(kk, 4)
        return dict(gamma=jax.random.uniform(ka, (c,), jnp.float32, 0.5, 1.5),
                    beta=jax.random.normal(kb, (c,), jnp.float32) * 0.1,
                    mean=jax.random.normal(kc, (c,), jnp.float32) * 0.1,
                    var=jax.random.uniform(kd, (c,), jnp.float32, 0.5, 1.5))

    def kaiming(kk, cout, cin):
        std = (2.0 / (cin * 9)) ** 0.5
        return jax.random.normal(kk, (cout, cin, 3, 3), jnp.float32) * std

    k1, k2, k3, k4 = jax.random.split(key, 4)
    return dict(conv1=kaiming(k1, planes, in_planes), bn1=bn_params(k3, planes),
                conv2=kaiming(k2, planes, planes), bn2=bn_params(k4, planes),
                stride=stride, in_planes=in_planes, planes=planes)


def prepare_basic_block(raw):
    """Fold BN into weights once, outside the per-forward trace."""
    return dict(prep1=prepare_conv_bn(raw["conv1"], raw["bn1"]),
                prep2=prepare_conv_bn(raw["conv2"], raw["bn2"]),
                stride=raw["stride"], in_planes=raw["in_planes"], planes=raw["planes"])


# --------------------------------------------------------------------------- reference
def _ref_conv_bn(x, w_oihw, bn, stride):
    w_hwio = jnp.transpose(w_oihw, (2, 3, 1, 0))
    y = lax.conv_general_dilated(x, w_hwio, (stride, stride), ((1, 1), (1, 1)),
                                 dimension_numbers=("NHWC", "HWIO", "NHWC"),
                                 precision=lax.Precision.HIGHEST)
    scale = bn["gamma"] / jnp.sqrt(bn["var"] + BN_EPS)
    return y * scale + (bn["beta"] - bn["mean"] * scale)


def _ref_basic_block(x, raw):
    out = jax.nn.relu(_ref_conv_bn(x, raw["conv1"], raw["bn1"], raw["stride"]))
    out = _ref_conv_bn(out, raw["conv2"], raw["bn2"], 1)
    sc = x
    if raw["stride"] != 1 or raw["in_planes"] != raw["planes"]:
        sc = _shortcut_a(x, raw["planes"])
    return jax.nn.relu(out + sc)


# --------------------------------------------------------------------------- main
if __name__ == "__main__":
    key = jax.random.PRNGKey(0)
    pkey, xkey = jax.random.split(key)

    # Transition block (exercises conv stride=2 + option-'A' zero-pad shortcut).
    in_planes, planes, stride = 16, 32, 2
    raw = init_basic_block(pkey, in_planes, planes, stride)
    blk = prepare_basic_block(raw)

    x_nchw = jax.random.normal(xkey, (2, in_planes, 16, 16), jnp.float32)  # NCHW like PyTorch

    fwd = jax.jit(lambda xx: basic_block_nchw(xx, blk))
    out = fwd(x_nchw)
    jax.block_until_ready(out)
    assert out.shape == (2, planes, 8, 8) and out.dtype == jnp.float32

    # Loose tolerance: Pallas matmul uses bf16 MXU inputs with f32 accumulation.
    ref = jnp.transpose(
        _ref_basic_block(jnp.transpose(x_nchw, (0, 2, 3, 1)), raw), (0, 3, 1, 2))
    max_err = float(jnp.max(jnp.abs(out - ref)))
    assert max_err < 1e-1, f"max abs error {max_err}"

    print("KERNEL_OK")
</pallas_src>

<mosaic_0001>
module attributes {stable_mosaic.version = 11 : i64} {
  func.func @_conv_bn_kernel(%arg0: i32, %arg1: memref<128x144xbf16, #tpu.memory_space<vmem>>, %arg2: memref<144x128xbf16, #tpu.memory_space<vmem>>, %arg3: memref<1x128xf32, #tpu.memory_space<vmem>>, %arg4: memref<128x128xf32, #tpu.memory_space<vmem>>) attributes {dimension_semantics = [#tpu.dimension_semantics<parallel>], iteration_bounds = array<i64: 1>, scalar_prefetch = 0 : i64, scratch_operands = 0 : i64, tpu.core_type = #tpu.core_type<tc>, window_params = [{transform_indices = @transform_0, window_bounds = array<i64: 128, 144>}, {pipeline_mode = #tpu.pipeline_mode<synchronous>, transform_indices = @transform_1, window_bounds = array<i64: 144, 128>}, {pipeline_mode = #tpu.pipeline_mode<synchronous>, transform_indices = @transform_2, window_bounds = array<i64: 1, 128>}, {transform_indices = @transform_3, window_bounds = array<i64: 128, 128>}]} {
    %c0 = arith.constant 0 : index
    %c0_0 = arith.constant 0 : index
    %0 = vector.load %arg1[%c0, %c0_0] : memref<128x144xbf16, #tpu.memory_space<vmem>>, vector<128x144xbf16>
    %c0_1 = arith.constant 0 : index
    %c0_2 = arith.constant 0 : index
    %1 = vector.load %arg2[%c0_1, %c0_2] : memref<144x128xbf16, #tpu.memory_space<vmem>>, vector<144x128xbf16>
    %cst = arith.constant dense<0.000000e+00> : vector<128x128xf32>
    %2 = tpu.matmul %0, %1, %cst {dimension_numbers = #tpu.dot_dimension_numbers<[1], [0], [0], [1], [0, 0, 1, 1], [], []>} : vector<128x144xbf16>, vector<144x128xbf16>, vector<128x128xf32> -> vector<128x128xf32>
    %c0_3 = arith.constant 0 : index
    %c0_4 = arith.constant 0 : index
    %3 = vector.load %arg3[%c0_3, %c0_4] : memref<1x128xf32, #tpu.memory_space<vmem>>, vector<1x128xf32>
    %4 = vector.broadcast %3 : vector<1x128xf32> to vector<128x128xf32>
    %5 = arith.addf %2, %4 : vector<128x128xf32>
    %cst_5 = arith.constant 0.000000e+00 : f32
    %6 = vector.broadcast %cst_5 : f32 to vector<128x128xf32>
    %7 = arith.maximumf %5, %6 : vector<128x128xf32>
    %c0_6 = arith.constant 0 : index
    %c0_7 = arith.constant 0 : index
    %8 = vector.load %arg4[%c0_6, %c0_7] : memref<128x128xf32, #tpu.memory_space<vmem>>, vector<128x128xf32>
    tpu.vector_store %arg4[%c0_6, %c0_7], %7 {strides = array<i32>} : memref<128x128xf32, #tpu.memory_space<vmem>>, vector<128x128xf32>,
    return
  }
  func.func @transform_0(%arg0: i32) -> (i32, i32) {
    %c0_i32 = arith.constant 0 : i32
    %c0_i32_0 = arith.constant 0 : i32
    return %arg0, %c0_i32 : i32, i32
  }
  func.func @transform_1(%arg0: i32) -> (i32, i32) {
    %c0_i32 = arith.constant 0 : i32
    %c0_i32_0 = arith.constant 0 : i32
    %c0_i32_1 = arith.constant 0 : i32
    return %c0_i32, %c0_i32_0 : i32, i32
  }
  func.func @transform_2(%arg0: i32) -> (i32, i32) {
    %c0_i32 = arith.constant 0 : i32
    %c0_i32_0 = arith.constant 0 : i32
    %c0_i32_1 = arith.constant 0 : i32
    return %c0_i32, %c0_i32_0 : i32, i32
  }
  func.func @transform_3(%arg0: i32) -> (i32, i32) {
    %c0_i32 = arith.constant 0 : i32
    %c0_i32_0 = arith.constant 0 : i32
    return %arg0, %c0_i32 : i32, i32
  }
}

module attributes {stable_mosaic.version = 11 : i64} {
  func.func @_conv_bn_kernel(%arg0: i32, %arg1: memref<128x288xbf16, #tpu.memory_space<vmem>>, %arg2: memref<288x128xbf16, #tpu.memory_space<vmem>>, %arg3: memref<1x128xf32, #tpu.memory_space<vmem>>, %arg4: memref<128x128xf32, #tpu.memory_space<vmem>>, %arg5: memref<128x128xf32, #tpu.memory_space<vmem>>) attributes {dimension_semantics = [#tpu.dimension_semantics<parallel>], iteration_bounds = array<i64: 1>, scalar_prefetch = 0 : i64, scratch_operands = 0 : i64, tpu.core_type = #tpu.core_type<tc>, window_params = [{transform_indices = @transform_0, window_bounds = array<i64: 128, 288>}, {pipeline_mode = #tpu.pipeline_mode<synchronous>, transform_indices = @transform_1, window_bounds = array<i64: 288, 128>}, {pipeline_mode = #tpu.pipeline_mode<synchronous>, transform_indices = @transform_2, window_bounds = array<i64: 1, 128>}, {transform_indices = @transform_3, window_bounds = array<i64: 128, 128>}, {transform_indices = @transform_4, window_bounds = array<i64: 128, 128>}]} {
    %c0 = arith.constant 0 : index
    %c0_0 = arith.constant 0 : index
    %0 = vector.load %arg1[%c0, %c0_0] : memref<128x288xbf16, #tpu.memory_space<vmem>>, vector<128x288xbf16>
    %c0_1 = arith.constant 0 : index
    %c0_2 = arith.constant 0 : index
    %1 = vector.load %arg2[%c0_1, %c0_2] : memref<288x128xbf16, #tpu.memory_space<vmem>>, vector<288x128xbf16>
    %cst = arith.constant dense<0.000000e+00> : vector<128x128xf32>
    %2 = tpu.matmul %0, %1, %cst {dimension_numbers = #tpu.dot_dimension_numbers<[1], [0], [0], [1], [0, 0, 1, 1], [], []>} : vector<128x288xbf16>, vector<288x128xbf16>, vector<128x128xf32> -> vector<128x128xf32>
    %c0_3 = arith.constant 0 : index
    %c0_4 = arith.constant 0 : index
    %3 = vector.load %arg3[%c0_3, %c0_4] : memref<1x128xf32, #tpu.memory_space<vmem>>, vector<1x128xf32>
    %4 = vector.broadcast %3 : vector<1x128xf32> to vector<128x128xf32>
    %5 = arith.addf %2, %4 : vector<128x128xf32>
    %c0_5 = arith.constant 0 : index
    %c0_6 = arith.constant 0 : index
    %6 = vector.load %arg4[%c0_5, %c0_6] : memref<128x128xf32, #tpu.memory_space<vmem>>, vector<128x128xf32>
    %7 = arith.addf %5, %6 : vector<128x128xf32>
    %cst_7 = arith.constant 0.000000e+00 : f32
    %8 = vector.broadcast %cst_7 : f32 to vector<128x128xf32>
    %9 = arith.maximumf %7, %8 : vector<128x128xf32>
    %c0_8 = arith.constant 0 : index
    %c0_9 = arith.constant 0 : index
    %10 = vector.load %arg5[%c0_8, %c0_9] : memref<128x128xf32, #tpu.memory_space<vmem>>, vector<128x128xf32>
    tpu.vector_store %arg5[%c0_8, %c0_9], %9 {strides = array<i32>} : memref<128x128xf32, #tpu.memory_space<vmem>>, vector<128x128xf32>,
    return
  }
  func.func @transform_0(%arg0: i32) -> (i32, i32) {
    %c0_i32 = arith.constant 0 : i32
    %c0_i32_0 = arith.constant 0 : i32
    return %arg0, %c0_i32 : i32, i32
  }
  func.func @transform_1(%arg0: i32) -> (i32, i32) {
    %c0_i32 = arith.constant 0 : i32
    %c0_i32_0 = arith.constant 0 : i32
    %c0_i32_1 = arith.constant 0 : i32
    return %c0_i32, %c0_i32_0 : i32, i32
  }
  func.func @transform_2(%arg0: i32) -> (i32, i32) {
    %c0_i32 = arith.constant 0 : i32
    %c0_i32_0 = arith.constant 0 : i32
    %c0_i32_1 = arith.constant 0 : i32
    return %c0_i32, %c0_i32_0 : i32, i32
  }
  func.func @transform_3(%arg0: i32) -> (i32, i32) {
    %c0_i32 = arith.constant 0 : i32
    %c0_i32_0 = arith.constant 0 : i32
    return %arg0, %c0_i32 : i32, i32
  }
  func.func @transform_4(%arg0: i32) -> (i32, i32) {
    %c0_i32 = arith.constant 0 : i32
    %c0_i32_0 = arith.constant 0 : i32
    return %arg0, %c0_i32 : i32, i32
  }
}

</mosaic_0001>

<llo_original>
// kernel: _lambda_.2
$region0: #{_lambda_.2}
  #allocation0 [shape = 'u32[]', space=smem, size = 0x4, offset = 0x4, fixed_abs, tag = 'smem constant byte address 0x4 - core index']
  #allocation1 [shape = 'u32[144,128]{1,0:T(1,128)}', space=vmem, size = 0x12000, scoped, tag = 'internal scratch']
  %s0 = inlined_call_operand.vmem [shape: bf16[128,144], index: 0, kind: input, shape index: {}]
  %s1 = inlined_call_operand.vmem [shape: bf16[144,128], index: 1, kind: input, shape index: {}]
  %s2 = inlined_call_operand.vmem [shape: f32[1,128], index: 2, kind: input, shape index: {}]
  %s3 = inlined_call_operand.vmem [shape: f32[128,128], index: 3, kind: output, shape index: {}]
  %s4 = sld [smem:[#allocation0]]
  $region22: #{_lambda_.2} parent=0
    _
  %s6 = ssub.s32 1, %s4
  %s7 = scalar_select 0, %s6, %s4
  // Predicated region
  $region2: #{_lambda_.2} parent=0 // pred_check
    _
  $region3: #{_lambda_.2} parent=0 // pred_check_branch
    %9 = sbr.rel (0) target = $region5
  $region4: #{_lambda_.2} parent=0 // pred_region
    _
  $region5: #{_lambda_.2} parent=0 // pred_fallthru
    _
  // Predicated region
  $region6: #{_lambda_.2} parent=0 // pred_check
    _
  $region7: #{_lambda_.2} parent=0 // pred_check_branch
    %11 = sbr.rel (0) target = $region9
  $region8: #{_lambda_.2} parent=0 // pred_region
    _
  $region9: #{_lambda_.2} parent=0 // pred_fallthru
    _
  // Predicated region
  $region10: #{_lambda_.2} parent=0 // pred_check
    _
  $region11: #{_lambda_.2} parent=0 // pred_check_branch
    %13 = sbr.rel (0) target = $region13
  $region12: #{_lambda_.2} parent=0 // pred_region
    _
  $region13: #{_lambda_.2} parent=0 // pred_fallthru
    _
  %v15 = vld [vmem:[%s0] sm:$0xff]
  %v16 = vld [vmem:[%s0 + $0x8] sm:$0xff]
  %v17 = vld [vmem:[%s0 + $0x10] sm:$0xff]
  %v18 = vld [vmem:[%s0 + $0x18] sm:$0xff]
  %v19 = vld [vmem:[%s0 + $0x20] sm:$0xff]
  %v20 = vld [vmem:[%s0 + $0x28] sm:$0xff]
  %v21 = vld [vmem:[%s0 + $0x30] sm:$0xff]
  %v22 = vld [vmem:[%s0 + $0x38] sm:$0xff]
  %v23 = vld [vmem:[%s0 + $0x40] sm:$0xff]
  %v24 = vld [vmem:[%s0 + $0x48] sm:$0xff]
  %v25 = vld [vmem:[%s0 + $0x50] sm:$0xff]
  %v26 = vld [vmem:[%s0 + $0x58] sm:$0xff]
  %v27 = vld [vmem:[%s0 + $0x60] sm:$0xff]
  %v28 = vld [vmem:[%s0 + $0x68] sm:$0xff]
  %v29 = vld [vmem:[%s0 + $0x70] sm:$0xff]
  %v30 = vld [vmem:[%s0 + $0x78] sm:$0xff]
  %v31 = vld [vmem:[%s1] sm:$0xf]
  %v32 = vld [vmem:[%s1 + $0x4] sm:$0xf]
  %v33 = vld [vmem:[%s1 + $0x8] sm:$0xf]
  %v34 = vld [vmem:[%s1 + $0xc] sm:$0xf]
  %v35 = vld [vmem:[%s1 + $0x10] sm:$0xf]
  %v36 = vld [vmem:[%s1 + $0x14] sm:$0xf]
  %v37 = vld [vmem:[%s1 + $0x18] sm:$0xf]
  %v38 = vld [vmem:[%s1 + $0x1c] sm:$0xf]
  %v39 = vld [vmem:[%s1 + $0x20] sm:$0xf]
  %v40 = vld [vmem:[%s1 + $0x24] sm:$0xf]
  %v41 = vld [vmem:[%s1 + $0x28] sm:$0xf]
  %v42 = vld [vmem:[%s1 + $0x2c] sm:$0xf]
  %v43 = vld [vmem:[%s1 + $0x30] sm:$0xf]
  %v44 = vld [vmem:[%s1 + $0x34] sm:$0xf]
  %v45 = vld [vmem:[%s1 + $0x38] sm:$0xf]
  %v46 = vld [vmem:[%s1 + $0x3c] sm:$0xf]
  %v47 = vld [vmem:[%s1 + $0x40] sm:$0xf]
  %v48 = vld [vmem:[%s1 + $0x44] sm:$0xf]
  %v49 = vld [vmem:[%s2] sm:$0x1]
  %v51 = vlaneseq
  %v52 = vshrl.u32 %v51, 7
  %v53 = vsub.s32 0, %v52
  %v54 = vrot.slane %v49, %v53
  %v72 = vunpack.c.l.b16 %v15
  %v73 = vunpack.c.h.b16 %v15
  %v74 = vunpack.c.l.b16 %v16
  %v75 = vunpack.c.h.b16 %v16
  %v76 = vunpack.c.l.b16 %v17
  %v77 = vunpack.c.h.b16 %v17
  %v78 = vunpack.c.l.b16 %v18
  %v79 = vunpack.c.h.b16 %v18
  %v80 = vunpack.c.l.b16 %v19
  %v81 = vunpack.c.h.b16 %v19
  %v82 = vunpack.c.l.b16 %v20
  %v83 = vunpack.c.h.b16 %v20
  %v84 = vunpack.c.l.b16 %v21
  %v85 = vunpack.c.h.b16 %v21
  %v86 = vunpack.c.l.b16 %v22
  %v87 = vunpack.c.h.b16 %v22
  %v88 = vunpack.c.l.b16 %v23
  %v89 = vunpack.c.h.b16 %v23
  %v90 = vunpack.c.l.b16 %v24
  %v91 = vunpack.c.h.b16 %v24
  %v92 = vunpack.c.l.b16 %v25
  %v93 = vunpack.c.h.b16 %v25
  %v94 = vunpack.c.l.b16 %v26
  %v95 = vunpack.c.h.b16 %v26
  %v96 = vunpack.c.l.b16 %v27
  %v97 = vunpack.c.h.b16 %v27
  %v98 = vunpack.c.l.b16 %v28
  %v99 = vunpack.c.h.b16 %v28
  %v100 = vunpack.c.l.b16 %v29
  %v101 = vunpack.c.h.b16 %v29
  %v102 = vunpack.c.l.b16 %v30
  %v103 = vunpack.c.h.b16 %v30
  %v104 = vpack.c.b16 %v74, %v72
  %v105 = vpack.c.b16 %v75, %v73
  %v106 = vpack.c.b16 %v78, %v76
  %v107 = vpack.c.b16 %v79, %v77
  %v108 = vpack.c.b16 %v82, %v80
  %v109 = vpack.c.b16 %v83, %v81
  %v110 = vpack.c.b16 %v86, %v84
  %v111 = vpack.c.b16 %v87, %v85
  %v112 = vpack.c.b16 %v90, %v88
  %v113 = vpack.c.b16 %v91, %v89
  %v114 = vpack.c.b16 %v94, %v92
  %v115 = vpack.c.b16 %v95, %v93
  %v116 = vpack.c.b16 %v98, %v96
  %v117 = vpack.c.b16 %v99, %v97
  %v118 = vpack.c.b16 %v102, %v100
  %v119 = vpack.c.b16 %v103, %v101
  %v146 = vunpack.c.l.b16 %v31
  %v147 = vunpack.c.l.b16 %v32
  %v148 = vunpack.c.l.b16 %v33
  %v149 = vunpack.c.l.b16 %v34
  %v150 = vunpack.c.l.b16 %v35
  %v151 = vunpack.c.l.b16 %v36
  %v152 = vunpack.c.l.b16 %v37
  %v153 = vunpack.c.l.b16 %v38
  %v154 = vunpack.c.l.b16 %v39
  %v155 = vunpack.c.l.b16 %v40
  %v156 = vunpack.c.l.b16 %v41
  %v157 = vunpack.c.l.b16 %v42
  %v158 = vunpack.c.l.b16 %v43
  %v159 = vunpack.c.l.b16 %v44
  %v160 = vunpack.c.l.b16 %v45
  %v161 = vunpack.c.l.b16 %v46
  %v162 = vunpack.c.l.b16 %v47
  %v163 = vunpack.c.l.b16 %v48
  %v164 = vpack.c.b16 %v147, %v146
  %v165 = vpack.c.b16 %v149, %v148
  %v166 = vpack.c.b16 %v151, %v150
  %v167 = vpack.c.b16 %v153, %v152
  %v168 = vpack.c.b16 %v155, %v154
  %v169 = vpack.c.b16 %v157, %v156
  %v170 = vpack.c.b16 %v159, %v158
  %v171 = vpack.c.b16 %v161, %v160
  %v172 = vpack.c.b16 %v163, %v162
  %vm182 = vcmask 130048
  %v184 = vsel %vm182, %v105, 0
  %v187 = vsel %vm182, %v107, 0
  %v190 = vsel %vm182, %v109, 0
  %v193 = vsel %vm182, %v111, 0
  %v196 = vsel %vm182, %v113, 0
  %v199 = vsel %vm182, %v115, 0
  %v202 = vsel %vm182, %v117, 0
  %v205 = vsel %vm182, %v119, 0
  %207 = vmatprep.subr.bf16.mxu0 0
  %208 = vmatpush1.bf16.msra.mxu0 %v171
  %209 = vmatprep.subr.bf16.mxu0 0
  %210 = vmatpush1.bf16.msra.mxu0 %v170
  %211 = vmatprep.subr.bf16.mxu0 0
  %212 = vmatpush1.bf16.msra.mxu0 %v169
  %213 = vmatprep.subr.bf16.mxu0 0
  %214 = vmatpush1.bf16.msra.mxu0 %v168
  %215 = vmatprep.subr.bf16.mxu0 0
  %216 = vmatpush1.bf16.msra.mxu0 %v167
  %217 = vmatprep.subr.bf16.mxu0 0
  %218 = vmatpush1.bf16.msra.mxu0 %v166
  %219 = vmatprep.subr.bf16.mxu0 0
  %220 = vmatpush1.bf16.msra.mxu0 %v165
  %221 = vmatprep.subr.bf16.mxu0 0
  %222 = vmatpush1.bf16.msra.mxu0 %v164
  %223 = vmatprep.subr.bf16.mxu0 0
  %224 = vmatpush2.bf16.msra.mxu0 0
  %225 = vmatprep.subr.bf16.mxu0 0
  %226 = vmatpush2.bf16.msra.mxu0 0
  %227 = vmatprep.subr.bf16.mxu0 0
  %228 = vmatpush2.bf16.msra.mxu0 0
  %229 = vmatprep.subr.bf16.mxu0 0
  %230 = vmatpush2.bf16.msra.mxu0 0
  %231 = vmatprep.subr.bf16.mxu0 0
  %232 = vmatpush2.bf16.msra.mxu0 0
  %233 = vmatprep.subr.bf16.mxu0 0
  %234 = vmatpush2.bf16.msra.mxu0 0
  %235 = vmatprep.subr.bf16.mxu0 0
  %236 = vmatpush2.bf16.msra.mxu0 0
  %237 = vmatprep.subr.bf16.mxu0 0
  %238 = vmatpush2.bf16.msra.mxu0 %v172
  %239 = vmatprep.mubr.bf16.mxu0 %v184
  %240 = vmatmul.mubr.bf16.gmra.mxu0 %v104
  %v241 = vpop.f32.mrf.mxu0
  %v242 = vadd.f32 %v54, %v241
  %v243 = vpop.f32.mrf.mxu0
  %v244 = vpop.f32.mrf.mxu0
  %v245 = vadd.f32 %v54, %v244
  %v246 = vpop.f32.mrf.mxu0
  %247 = vmatprep.mubr.bf16.mxu0 %v187
  %248 = vmatmul.mubr.bf16.gmra.mxu0 %v106
  %v249 = vpop.f32.mrf.mxu0
  %v250 = vadd.f32 %v54, %v249
  %v251 = vpop.f32.mrf.mxu0
  %v252 = vpop.f32.mrf.mxu0
  %v253 = vadd.f32 %v54, %v252
  %v254 = vpop.f32.mrf.mxu0
  %255 = vmatprep.mubr.bf16.mxu0 %v190
  %256 = vmatmul.mubr.bf16.gmra.mxu0 %v108
  %v257 = vpop.f32.mrf.mxu0
  %v258 = vadd.f32 %v54, %v257
  %v259 = vpop.f32.mrf.mxu0
  %v260 = vpop.f32.mrf.mxu0
  %v261 = vadd.f32 %v54, %v260
  %v262 = vpop.f32.mrf.mxu0
  %263 = vmatprep.mubr.bf16.mxu0 %v193
  %264 = vmatmul.mubr.bf16.gmra.mxu0 %v110
  %v265 = vpop.f32.mrf.mxu0
  %v266 = vadd.f32 %v54, %v265
  %v267 = vpop.f32.mrf.mxu0
  %v268 = vpop.f32.mrf.mxu0
  %v269 = vadd.f32 %v54, %v268
  %v270 = vpop.f32.mrf.mxu0
  %271 = vmatprep.mubr.bf16.mxu0 %v196
  %272 = vmatmul.mubr.bf16.gmra.mxu0 %v112
  %v273 = vpop.f32.mrf.mxu0
  %v274 = vadd.f32 %v54, %v273
  %v275 = vpop.f32.mrf.mxu0
  %v276 = vpop.f32.mrf.mxu0
  %v277 = vadd.f32 %v54, %v276
  %v278 = vpop.f32.mrf.mxu0
  %279 = vmatprep.mubr.bf16.mxu0 %v199
  %280 = vmatmul.mubr.bf16.gmra.mxu0 %v114
  %v281 = vpop.f32.mrf.mxu0
  %v282 = vadd.f32 %v54, %v281
  %v283 = vpop.f32.mrf.mxu0
  %v284 = vpop.f32.mrf.mxu0
  %v285 = vadd.f32 %v54, %v284
  %v286 = vpop.f32.mrf.mxu0
  %287 = vmatprep.mubr.bf16.mxu0 %v202
  %288 = vmatmul.mubr.bf16.gmra.mxu0 %v116
  %v289 = vpop.f32.mrf.mxu0
  %v290 = vadd.f32 %v54, %v289
  %v291 = vpop.f32.mrf.mxu0
  %v292 = vpop.f32.mrf.mxu0
  %v293 = vadd.f32 %v54, %v292
  %v294 = vpop.f32.mrf.mxu0
  %295 = vmatprep.mubr.bf16.mxu0 %v205
  %296 = vmatmul.mubr.bf16.gmra.mxu0 %v118
  %v297 = vpop.f32.mrf.mxu0
  %v298 = vadd.f32 %v54, %v297
  %v299 = vpop.f32.mrf.mxu0
  %v300 = vpop.f32.mrf.mxu0
  %v301 = vadd.f32 %v54, %v300
  %v302 = vpop.f32.mrf.mxu0
  %303 = vdwg.mxu0
  %v304 = vmax.f32 %v242, 0.0
  %v305 = vmax.f32 %v245, 0.0
  %v306 = vmax.f32 %v250, 0.0
  %v307 = vmax.f32 %v253, 0.0
  %v308 = vmax.f32 %v258, 0.0
  %v309 = vmax.f32 %v261, 0.0
  %v310 = vmax.f32 %v266, 0.0
  %v311 = vmax.f32 %v269, 0.0
  %v312 = vmax.f32 %v274, 0.0
  %v313 = vmax.f32 %v277, 0.0
  %v314 = vmax.f32 %v282, 0.0
  %v315 = vmax.f32 %v285, 0.0
  %v316 = vmax.f32 %v290, 0.0
  %v317 = vmax.f32 %v293, 0.0
  %v318 = vmax.f32 %v298, 0.0
  %v319 = vmax.f32 %v301, 0.0
  %320 = vst [vmem:[%s3] sm:$0xff] %v304
  %321 = vst [vmem:[%s3 + $0x8] sm:$0xff] %v305
  %322 = vst [vmem:[%s3 + $0x10] sm:$0xff] %v306
  %323 = vst [vmem:[%s3 + $0x18] sm:$0xff] %v307
  %324 = vst [vmem:[%s3 + $0x20] sm:$0xff] %v308
  %325 = vst [vmem:[%s3 + $0x28] sm:$0xff] %v309
  %326 = vst [vmem:[%s3 + $0x30] sm:$0xff] %v310
  %327 = vst [vmem:[%s3 + $0x38] sm:$0xff] %v311
  %328 = vst [vmem:[%s3 + $0x40] sm:$0xff] %v312
  %329 = vst [vmem:[%s3 + $0x48] sm:$0xff] %v313
  %330 = vst [vmem:[%s3 + $0x50] sm:$0xff] %v314
  %331 = vst [vmem:[%s3 + $0x58] sm:$0xff] %v315
  %332 = vst [vmem:[%s3 + $0x60] sm:$0xff] %v316
  %333 = vst [vmem:[%s3 + $0x68] sm:$0xff] %v317
  %334 = vst [vmem:[%s3 + $0x70] sm:$0xff] %v318
  %335 = vst [vmem:[%s3 + $0x78] sm:$0xff] %v319
  // Predicated region
  $region14: #{_lambda_.2} parent=0 // pred_check
    _
  $region15: #{_lambda_.2} parent=0 // pred_check_branch
    %337 = sbr.rel (0) target = $region17
  $region16: #{_lambda_.2} parent=0 // pred_region
    _
  $region17: #{_lambda_.2} parent=0 // pred_fallthru
    _
  // Predicated region
  $region18: #{_lambda_.2} parent=0 // pred_check
    _
  $region19: #{_lambda_.2} parent=0 // pred_check_branch
    %339 = sbr.rel (0) target = $region21
  $region20: #{_lambda_.2} parent=0 // pred_region
    _
  $region21: #{_lambda_.2} parent=0 // pred_fallthru
    _

// kernel: _lambda_.3
$region0: #{_lambda_.3}
  #allocation0 [shape = 'u32[]', space=smem, size = 0x4, offset = 0x4, fixed_abs, tag = 'smem constant byte address 0x4 - core index']
  #allocation1 [shape = 'u32[144,128]{1,0:T(1,128)}', space=vmem, size = 0x12000, scoped, tag = 'internal scratch']
  %s0 = inlined_call_operand.vmem [shape: bf16[128,288], index: 0, kind: input, shape index: {}]
  %s1 = inlined_call_operand.vmem [shape: bf16[288,128], index: 1, kind: input, shape index: {}]
  %s2 = inlined_call_operand.vmem [shape: f32[1,128], index: 2, kind: input, shape index: {}]
  %s3 = inlined_call_operand.vmem [shape: f32[128,128], index: 3, kind: input, shape index: {}]
  %s4 = inlined_call_operand.hbm [shape: f32[128,128], index: 4, kind: output, shape index: {}]
  %s5 = sld [smem:[#allocation0]]
  $region26: #{_lambda_.3} parent=0
    _
  %s7 = ssub.s32 1, %s5
  %s8 = scalar_select 0, %s7, %s5
  $region1: #{_lambda_.3} parent=0
    #allocation2 [shape = 'u8[65536]{0}', space=vmem, size = 0x10000, scoped, tag = 'output window, operand 0, single buffered']
    #allocation3 [shape = 's32[1]{0}', space=sflag, size = 0x4, scoped, tag = 'scoped memory for _lambda_.3']
    %9 = vsyncpa [#allocation3], 0
    // Predicated region
    $region2: #{_lambda_.3} parent=1 // pred_check
      _
    $region3: #{_lambda_.3} parent=1 // pred_check_branch
      %11 = sbr.rel (0) target = $region5
    $region4: #{_lambda_.3} parent=1 // pred_region
      _
    $region5: #{_lambda_.3} parent=1 // pred_fallthru
      _
    // Predicated region
    $region6: #{_lambda_.3} parent=1 // pred_check
      _
    $region7: #{_lambda_.3} parent=1 // pred_check_branch
      %13 = sbr.rel (0) target = $region9
    $region8: #{_lambda_.3} parent=1 // pred_region
      _
    $region9: #{_lambda_.3} parent=1 // pred_fallthru
      _
    // Predicated region
    $region10: #{_lambda_.3} parent=1 // pred_check
      _
    $region11: #{_lambda_.3} parent=1 // pred_check_branch
      %15 = sbr.rel (0) target = $region13
    $region12: #{_lambda_.3} parent=1 // pred_region
      _
    $region13: #{_lambda_.3} parent=1 // pred_fallthru
      _
    // Predicated region
    $region14: #{_lambda_.3} parent=1 // pred_check
      _
    $region15: #{_lambda_.3} parent=1 // pred_check_branch
      %17 = sbr.rel (0) target = $region17
    $region16: #{_lambda_.3} parent=1 // pred_region
      _
    $region17: #{_lambda_.3} parent=1 // pred_fallthru
      _
    %v19 = vld [vmem:[%s0] sm:$0xff]
    %v20 = vld [vmem:[%s0 + $0x8] sm:$0xf]
    %v21 = vld [vmem:[%s0 + $0xc] sm:$0xff]
    %v22 = vld [vmem:[%s0 + $0x14] sm:$0xf]
    %v23 = vld [vmem:[%s0 + $0x18] sm:$0xff]
    %v24 = vld [vmem:[%s0 + $0x20] sm:$0xf]
    %v25 = vld [vmem:[%s0 + $0x24] sm:$0xff]
    %v26 = vld [vmem:[%s0 + $0x2c] sm:$0xf]
    %v27 = vld [vmem:[%s0 + $0x30] sm:$0xff]
    %v28 = vld [vmem:[%s0 + $0x38] sm:$0xf]
    %v29 = vld [vmem:[%s0 + $0x3c] sm:$0xff]
    %v30 = vld [vmem:[%s0 + $0x44] sm:$0xf]
    %v31 = vld [vmem:[%s0 + $0x48] sm:$0xff]
    %v32 = vld [vmem:[%s0 + $0x50] sm:$0xf]
    %v33 = vld [vmem:[%s0 + $0x54] sm:$0xff]
    %v34 = vld [vmem:[%s0 + $0x5c] sm:$0xf]
    %v35 = vld [vmem:[%s0 + $0x60] sm:$0xff]
    %v36 = vld [vmem:[%s0 + $0x68] sm:$0xf]
    %v37 = vld [vmem:[%s0 + $0x6c] sm:$0xff]
    %v38 = vld [vmem:[%s0 + $0x74] sm:$0xf]
    %v39 = vld [vmem:[%s0 + $0x78] sm:$0xff]
    %v40 = vld [vmem:[%s0 + $0x80] sm:$0xf]
    %v41 = vld [vmem:[%s0 + $0x84] sm:$0xff]
    %v42 = vld [vmem:[%s0 + $0x8c] sm:$0xf]
    %v43 = vld [vmem:[%s0 + $0x90] sm:$0xff]
    %v44 = vld [vmem:[%s0 + $0x98] sm:$0xf]
    %v45 = vld [vmem:[%s0 + $0x9c] sm:$0xff]
    %v46 = vld [vmem:[%s0 + $0xa4] sm:$0xf]
    %v47 = vld [vmem:[%s0 + $0xa8] sm:$0xff]
    %v48 = vld [vmem:[%s0 + $0xb0] sm:$0xf]
    %v49 = vld [vmem:[%s0 + $0xb4] sm:$0xff]
    %v50 = vld [vmem:[%s0 + $0xbc] sm:$0xf]
    %v51 = vld [vmem:[%s1] sm:$0xf]
    %v52 = vld [vmem:[%s1 + $0x4] sm:$0xf]
    %v53 = vld [vmem:[%s1 + $0x8] sm:$0xf]
    %v54 = vld [vmem:[%s1 + $0xc] sm:$0xf]
    %v55 = vld [vmem:[%s1 + $0x10] sm:$0xf]
    %v56 = vld [vmem:[%s1 + $0x14] sm:$0xf]
    %v57 = vld [vmem:[%s1 + $0x18] sm:$0xf]
    %v58 = vld [vmem:[%s1 + $0x1c] sm:$0xf]
    %v59 = vld [vmem:[%s1 + $0x20] sm:$0xf]
    %v60 = vld [vmem:[%s1 + $0x24] sm:$0xf]
    %v61 = vld [vmem:[%s1 + $0x28] sm:$0xf]
    %v62 = vld [vmem:[%s1 + $0x2c] sm:$0xf]
    %v63 = vld [vmem:[%s1 + $0x30] sm:$0xf]
    %v64 = vld [vmem:[%s1 + $0x34] sm:$0xf]
    %v65 = vld [vmem:[%s1 + $0x38] sm:$0xf]
    %v66 = vld [vmem:[%s1 + $0x3c] sm:$0xf]
    %v67 = vld [vmem:[%s1 + $0x40] sm:$0xf]
    %v68 = vld [vmem:[%s1 + $0x44] sm:$0xf]
    %v69 = vld [vmem:[%s1 + $0x48] sm:$0xf]
    %v70 = vld [vmem:[%s1 + $0x4c] sm:$0xf]
    %v71 = vld [vmem:[%s1 + $0x50] sm:$0xf]
    %v72 = vld [vmem:[%s1 + $0x54] sm:$0xf]
    %v73 = vld [vmem:[%s1 + $0x58] sm:$0xf]
    %v74 = vld [vmem:[%s1 + $0x5c] sm:$0xf]
    %v75 = vld [vmem:[%s1 + $0x60] sm:$0xf]
    %v76 = vld [vmem:[%s1 + $0x64] sm:$0xf]
    %v77 = vld [vmem:[%s1 + $0x68] sm:$0xf]
    %v78 = vld [vmem:[%s1 + $0x6c] sm:$0xf]
    %v79 = vld [vmem:[%s1 + $0x70] sm:$0xf]
    %v80 = vld [vmem:[%s1 + $0x74] sm:$0xf]
    %v81 = vld [vmem:[%s1 + $0x78] sm:$0xf]
    %v82 = vld [vmem:[%s1 + $0x7c] sm:$0xf]
    %v83 = vld [vmem:[%s1 + $0x80] sm:$0xf]
    %v84 = vld [vmem:[%s1 + $0x84] sm:$0xf]
    %v85 = vld [vmem:[%s1 + $0x88] sm:$0xf]
    %v86 = vld [vmem:[%s1 + $0x8c] sm:$0xf]
    %v87 = vld [vmem:[%s2] sm:$0x1]
    %v89 = vlaneseq
    %v90 = vshrl.u32 %v89, 7
    %v91 = vsub.s32 0, %v90
    %v92 = vrot.slane %v87, %v91
    %v126 = vunpack.c.l.b16 %v19
    %v127 = vunpack.c.h.b16 %v19
    %v128 = vunpack.c.l.b16 %v20
    %v129 = vunpack.c.l.b16 %v21
    %v130 = vunpack.c.h.b16 %v21
    %v131 = vunpack.c.l.b16 %v22
    %v132 = vunpack.c.l.b16 %v23
    %v133 = vunpack.c.h.b16 %v23
    %v134 = vunpack.c.l.b16 %v24
    %v135 = vunpack.c.l.b16 %v25
    %v136 = vunpack.c.h.b16 %v25
    %v137 = vunpack.c.l.b16 %v26
    %v138 = vunpack.c.l.b16 %v27
    %v139 = vunpack.c.h.b16 %v27
    %v140 = vunpack.c.l.b16 %v28
    %v141 = vunpack.c.l.b16 %v29
    %v142 = vunpack.c.h.b16 %v29
    %v143 = vunpack.c.l.b16 %v30
    %v144 = vunpack.c.l.b16 %v31
    %v145 = vunpack.c.h.b16 %v31
    %v146 = vunpack.c.l.b16 %v32
    %v147 = vunpack.c.l.b16 %v33
    %v148 = vunpack.c.h.b16 %v33
    %v149 = vunpack.c.l.b16 %v34
    %v150 = vunpack.c.l.b16 %v35
    %v151 = vunpack.c.h.b16 %v35
    %v152 = vunpack.c.l.b16 %v36
    %v153 = vunpack.c.l.b16 %v37
    %v154 = vunpack.c.h.b16 %v37
    %v155 = vunpack.c.l.b16 %v38
    %v156 = vunpack.c.l.b16 %v39
    %v157 = vunpack.c.h.b16 %v39
    %v158 = vunpack.c.l.b16 %v40
    %v159 = vunpack.c.l.b16 %v41
    %v160 = vunpack.c.h.b16 %v41
    %v161 = vunpack.c.l.b16 %v42
    %v162 = vunpack.c.l.b16 %v43
    %v163 = vunpack.c.h.b16 %v43
    %v164 = vunpack.c.l.b16 %v44
    %v165 = vunpack.c.l.b16 %v45
    %v166 = vunpack.c.h.b16 %v45
    %v167 = vunpack.c.l.b16 %v46
    %v168 = vunpack.c.l.b16 %v47
    %v169 = vunpack.c.h.b16 %v47
    %v170 = vunpack.c.l.b16 %v48
    %v171 = vunpack.c.l.b16 %v49
    %v172 = vunpack.c.h.b16 %v49
    %v173 = vunpack.c.l.b16 %v50
    %v174 = vpack.c.b16 %v129, %v126
    %v175 = vpack.c.b16 %v130, %v127
    %v176 = vpack.c.b16 %v131, %v128
    %v177 = vpack.c.b16 %v135, %v132
    %v178 = vpack.c.b16 %v136, %v133
    %v179 = vpack.c.b16 %v137, %v134
    %v180 = vpack.c.b16 %v141, %v138
    %v181 = vpack.c.b16 %v142, %v139
    %v182 = vpack.c.b16 %v143, %v140
    %v183 = vpack.c.b16 %v147, %v144
    %v184 = vpack.c.b16 %v148, %v145
    %v185 = vpack.c.b16 %v149, %v146
    %v186 = vpack.c.b16 %v153, %v150
    %v187 = vpack.c.b16 %v154, %v151
    %v188 = vpack.c.b16 %v155, %v152
    %v189 = vpack.c.b16 %v159, %v156
    %v190 = vpack.c.b16 %v160, %v157
    %v191 = vpack.c.b16 %v161, %v158
    %v192 = vpack.c.b16 %v165, %v162
    %v193 = vpack.c.b16 %v166, %v163
    %v194 = vpack.c.b16 %v167, %v164
    %v195 = vpack.c.b16 %v171, %v168
    %v196 = vpack.c.b16 %v172, %v169
    %v197 = vpack.c.b16 %v173, %v170
    %v250 = vunpack.c.l.b16 %v51
    %v251 = vunpack.c.l.b16 %v52
    %v252 = vunpack.c.l.b16 %v53
    %v253 = vunpack.c.l.b16 %v54
    %v254 = vunpack.c.l.b16 %v55
    %v255 = vunpack.c.l.b16 %v56
    %v256 = vunpack.c.l.b16 %v57
    %v257 = vunpack.c.l.b16 %v58
    %v258 = vunpack.c.l.b16 %v59
    %v259 = vunpack.c.l.b16 %v60
    %v260 = vunpack.c.l.b16 %v61
    %v261 = vunpack.c.l.b16 %v62
    %v262 = vunpack.c.l.b16 %v63
    %v263 = vunpack.c.l.b16 %v64
    %v264 = vunpack.c.l.b16 %v65
    %v265 = vunpack.c.l.b16 %v66
    %v266 = vunpack.c.l.b16 %v67
    %v267 = vunpack.c.l.b16 %v68
    %v268 = vunpack.c.l.b16 %v69
    %v269 = vunpack.c.l.b16 %v70
    %v270 = vunpack.c.l.b16 %v71
    %v271 = vunpack.c.l.b16 %v72
    %v272 = vunpack.c.l.b16 %v73
    %v273 = vunpack.c.l.b16 %v74
    %v274 = vunpack.c.l.b16 %v75
    %v275 = vunpack.c.l.b16 %v76
    %v276 = vunpack.c.l.b16 %v77
    %v277 = vunpack.c.l.b16 %v78
    %v278 = vunpack.c.l.b16 %v79
    %v279 = vunpack.c.l.b16 %v80
    %v280 = vunpack.c.l.b16 %v81
    %v281 = vunpack.c.l.b16 %v82
    %v282 = vunpack.c.l.b16 %v83
    %v283 = vunpack.c.l.b16 %v84
    %v284 = vunpack.c.l.b16 %v85
    %v285 = vunpack.c.l.b16 %v86
    %v286 = vpack.c.b16 %v251, %v250
    %v287 = vpack.c.b16 %v253, %v252
    %v288 = vpack.c.b16 %v255, %v254
    %v289 = vpack.c.b16 %v257, %v256
    %v290 = vpack.c.b16 %v259, %v258
    %v291 = vpack.c.b16 %v261, %v260
    %v292 = vpack.c.b16 %v263, %v262
    %v293 = vpack.c.b16 %v265, %v264
    %v294 = vpack.c.b16 %v267, %v266
    %v295 = vpack.c.b16 %v269, %v268
    %v296 = vpack.c.b16 %v271, %v270
    %v297 = vpack.c.b16 %v273, %v272
    %v298 = vpack.c.b16 %v275, %v274
    %v299 = vpack.c.b16 %v277, %v276
    %v300 = vpack.c.b16 %v279, %v278
    %v301 = vpack.c.b16 %v281, %v280
    %v302 = vpack.c.b16 %v283, %v282
    %v303 = vpack.c.b16 %v285, %v284
    %vm322 = vcmask 261120
    %v324 = vsel %vm322, %v176, 0
    %v327 = vsel %vm322, %v179, 0
    %v330 = vsel %vm322, %v182, 0
    %v333 = vsel %vm322, %v185, 0
    %v336 = vsel %vm322, %v188, 0
    %v339 = vsel %vm322, %v191, 0
    %v342 = vsel %vm322, %v194, 0
    %v345 = vsel %vm322, %v197, 0
    %347 = vmatprep.subr.bf16.mxu0 0
    %348 = vmatpush1.bf16.msra.mxu0 %v293
    %349 = vmatprep.subr.bf16.mxu0 0
    %350 = vmatpush1.bf16.msra.mxu0 %v292
    %351 = vmatprep.subr.bf16.mxu0 0
    %352 = vmatpush1.bf16.msra.mxu0 %v291
    %353 = vmatprep.subr.bf16.mxu0 0
    %354 = vmatpush1.bf16.msra.mxu0 %v290
    %355 = vmatprep.subr.bf16.mxu0 0
    %356 = vmatpush1.bf16.msra.mxu0 %v289
    %357 = vmatprep.subr.bf16.mxu0 0
    %358 = vmatpush1.bf16.msra.mxu0 %v288
    %359 = vmatprep.subr.bf16.mxu0 0
    %360 = vmatpush1.bf16.msra.mxu0 %v287
    %361 = vmatprep.subr.bf16.mxu0 0
    %362 = vmatpush1.bf16.msra.mxu0 %v286
    %363 = vmatprep.subr.bf16.mxu0 0
    %364 = vmatpush2.bf16.msra.mxu0 %v301
    %365 = vmatprep.subr.bf16.mxu0 0
    %366 = vmatpush2.bf16.msra.mxu0 %v300
    %367 = vmatprep.subr.bf16.mxu0 0
    %368 = vmatpush2.bf16.msra.mxu0 %v299
    %369 = vmatprep.subr.bf16.mxu0 0
    %370 = vmatpush2.bf16.msra.mxu0 %v298
    %371 = vmatprep.subr.bf16.mxu0 0
    %372 = vmatpush2.bf16.msra.mxu0 %v297
    %373 = vmatprep.subr.bf16.mxu0 0
    %374 = vmatpush2.bf16.msra.mxu0 %v296
    %375 = vmatprep.subr.bf16.mxu0 0
    %376 = vmatpush2.bf16.msra.mxu0 %v295
    %377 = vmatprep.subr.bf16.mxu0 0
    %378 = vmatpush2.bf16.msra.mxu0 %v294
    %379 = vmatprep.mubr.bf16.mxu0 %v175
    %380 = vmatmul.mubr.bf16.gmra.mxu0 %v174
    %v381 = vpop.f32.mrf.mxu0
    %v382 = vadd.f32 %v92, %v381
    %v383 = vpop.f32.mrf.mxu0
    %v384 = vpop.f32.mrf.mxu0
    %v385 = vadd.f32 %v92, %v384
    %v386 = vpop.f32.mrf.mxu0
    %387 = vmatprep.mubr.bf16.mxu0 %v178
    %388 = vmatmul.mubr.bf16.gmra.mxu0 %v177
    %v389 = vpop.f32.mrf.mxu0
    %v390 = vadd.f32 %v92, %v389
    %v391 = vpop.f32.mrf.mxu0
    %v392 = vpop.f32.mrf.mxu0
    %v393 = vadd.f32 %v92, %v392
    %v394 = vpop.f32.mrf.mxu0
    %395 = vmatprep.mubr.bf16.mxu0 %v181
    %396 = vmatmul.mubr.bf16.gmra.mxu0 %v180
    %v397 = vpop.f32.mrf.mxu0
    %v398 = vadd.f32 %v92, %v397
    %v399 = vpop.f32.mrf.mxu0
    %v400 = vpop.f32.mrf.mxu0
    %v401 = vadd.f32 %v92, %v400
    %v402 = vpop.f32.mrf.mxu0
    %403 = vmatprep.mubr.bf16.mxu0 %v184
    %404 = vmatmul.mubr.bf16.gmra.mxu0 %v183
    %v405 = vpop.f32.mrf.mxu0
    %v406 = vadd.f32 %v92, %v405
    %v407 = vpop.f32.mrf.mxu0
    %v408 = vpop.f32.mrf.mxu0
    %v409 = vadd.f32 %v92, %v408
    %v410 = vpop.f32.mrf.mxu0
    %411 = vmatprep.mubr.bf16.mxu0 %v187
    %412 = vmatmul.mubr.bf16.gmra.mxu0 %v186
    %v413 = vpop.f32.mrf.mxu0
    %v414 = vadd.f32 %v92, %v413
    %v415 = vpop.f32.mrf.mxu0
    %v416 = vpop.f32.mrf.mxu0
    %v417 = vadd.f32 %v92, %v416
    %v418 = vpop.f32.mrf.mxu0
    %419 = vmatprep.mubr.bf16.mxu0 %v190
    %420 = vmatmul.mubr.bf16.gmra.mxu0 %v189
    %v421 = vpop.f32.mrf.mxu0
    %v422 = vadd.f32 %v92, %v421
    %v423 = vpop.f32.mrf.mxu0
    %v424 = vpop.f32.mrf.mxu0
    %v425 = vadd.f32 %v92, %v424
    %v426 = vpop.f32.mrf.mxu0
    %427 = vmatprep.mubr.bf16.mxu0 %v193
    %428 = vmatmul.mubr.bf16.gmra.mxu0 %v192
    %v429 = vpop.f32.mrf.mxu0
    %v430 = vadd.f32 %v92, %v429
    %v431 = vpop.f32.mrf.mxu0
    %v432 = vpop.f32.mrf.mxu0
    %v433 = vadd.f32 %v92, %v432
    %v434 = vpop.f32.mrf.mxu0
    %435 = vmatprep.mubr.bf16.mxu0 %v196
    %436 = vmatmul.mubr.bf16.gmra.mxu0 %v195
    %v437 = vpop.f32.mrf.mxu0
    %v438 = vadd.f32 %v92, %v437
    %v439 = vpop.f32.mrf.mxu0
    %v440 = vpop.f32.mrf.mxu0
    %v441 = vadd.f32 %v92, %v440
    %v442 = vpop.f32.mrf.mxu0
    %443 = vdwg.mxu0
    %444 = vmatprep.subr.bf16.mxu0 0
    %445 = vmatpush1.bf16.msra.mxu0 0
    %446 = vmatprep.subr.bf16.mxu0 0
    %447 = vmatpush1.bf16.msra.mxu0 0
    %448 = vmatprep.subr.bf16.mxu0 0
    %449 = vmatpush1.bf16.msra.mxu0 0
    %450 = vmatprep.subr.bf16.mxu0 0
    %451 = vmatpush1.bf16.msra.mxu0 0
    %452 = vmatprep.subr.bf16.mxu0 0
    %453 = vmatpush1.bf16.msra.mxu0 0
    %454 = vmatprep.subr.bf16.mxu0 0
    %455 = vmatpush1.bf16.msra.mxu0 0
    %456 = vmatprep.subr.bf16.mxu0 0
    %457 = vmatpush1.bf16.msra.mxu0 %v303
    %458 = vmatprep.subr.bf16.mxu0 0
    %459 = vmatpush1.bf16.msra.mxu0 %v302
    %460 = vmatprep.subr.bf16.mxu0 0
    %461 = vmatpush2.bf16.msra.mxu0 0
    %462 = vmatprep.subr.bf16.mxu0 0
    %463 = vmatpush2.bf16.msra.mxu0 0
    %464 = vmatprep.subr.bf16.mxu0 0
    %465 = vmatpush2.bf16.msra.mxu0 0
    %466 = vmatprep.subr.bf16.mxu0 0
    %467 = vmatpush2.bf16.msra.mxu0 0
    %468 = vmatprep.subr.bf16.mxu0 0
    %469 = vmatpush2.bf16.msra.mxu0 0
    %470 = vmatprep.subr.bf16.mxu0 0
    %471 = vmatpush2.bf16.msra.mxu0 0
    %472 = vmatprep.subr.bf16.mxu0 0
    %473 = vmatpush2.bf16.msra.mxu0 0
    %474 = vmatprep.subr.bf16.mxu0 0
    %475 = vmatpush2.bf16.msra.mxu0 0
    %476 = vmatprep.mubr.bf16.mxu0 0
    %477 = vmatmul.mubr.bf16.gmra.mxu0 %v324
    %v478 = vpop.f32.mrf.mxu0
    %v479 = vadd.f32 %v382, %v478
    %v480 = vpop.f32.mrf.mxu0
    %v481 = vpop.f32.mrf.mxu0
    %v482 = vadd.f32 %v385, %v481
    %v483 = vpop.f32.mrf.mxu0
    %484 = vmatprep.mubr.bf16.mxu0 0
    %485 = vmatmul.mubr.bf16.gmra.mxu0 %v327
    %v486 = vpop.f32.mrf.mxu0
    %v487 = vadd.f32 %v390, %v486
    %v488 = vpop.f32.mrf.mxu0
    %v489 = vpop.f32.mrf.mxu0
    %v490 = vadd.f32 %v393, %v489
    %v491 = vpop.f32.mrf.mxu0
    %492 = vmatprep.mubr.bf16.mxu0 0
    %493 = vmatmul.mubr.bf16.gmra.mxu0 %v330
    %v494 = vpop.f32.mrf.mxu0
    %v495 = vadd.f32 %v398, %v494
    %v496 = vpop.f32.mrf.mxu0
    %v497 = vpop.f32.mrf.mxu0
    %v498 = vadd.f32 %v401, %v497
    %v499 = vpop.f32.mrf.mxu0
    %500 = vmatprep.mubr.bf16.mxu0 0
    %501 = vmatmul.mubr.bf16.gmra.mxu0 %v333
    %v502 = vpop.f32.mrf.mxu0
    %v503 = vadd.f32 %v406, %v502
    %v504 = vpop.f32.mrf.mxu0
    %v505 = vpop.f32.mrf.mxu0
    %v506 = vadd.f32 %v409, %v505
    %v507 = vpop.f32.mrf.mxu0
    %508 = vmatprep.mubr.bf16.mxu0 0
    %509 = vmatmul.mubr.bf16.gmra.mxu0 %v336
    %v510 = vpop.f32.mrf.mxu0
    %v511 = vadd.f32 %v414, %v510
    %v512 = vpop.f32.mrf.mxu0
    %v513 = vpop.f32.mrf.mxu0
    %v514 = vadd.f32 %v417, %v513
    %v515 = vpop.f32.mrf.mxu0
    %516 = vmatprep.mubr.bf16.mxu0 0
    %517 = vmatmul.mubr.bf16.gmra.mxu0 %v339
    %v518 = vpop.f32.mrf.mxu0
    %v519 = vadd.f32 %v422, %v518
    %v520 = vpop.f32.mrf.mxu0
    %v521 = vpop.f32.mrf.mxu0
    %v522 = vadd.f32 %v425, %v521
    %v523 = vpop.f32.mrf.mxu0
    %524 = vmatprep.mubr.bf16.mxu0 0
    %525 = vmatmul.mubr.bf16.gmra.mxu0 %v342
    %v526 = vpop.f32.mrf.mxu0
    %v527 = vadd.f32 %v430, %v526
    %v528 = vpop.f32.mrf.mxu0
    %v529 = vpop.f32.mrf.mxu0
    %v530 = vadd.f32 %v433, %v529
    %v531 = vpop.f32.mrf.mxu0
    %532 = vmatprep.mubr.bf16.mxu0 0
    %533 = vmatmul.mubr.bf16.gmra.mxu0 %v345
    %v534 = vpop.f32.mrf.mxu0
    %v535 = vadd.f32 %v438, %v534
    %v536 = vpop.f32.mrf.mxu0
    %v537 = vpop.f32.mrf.mxu0
    %v538 = vadd.f32 %v441, %v537
    %v539 = vpop.f32.mrf.mxu0
    %540 = vdwg.mxu0
    %v541 = vld [vmem:[%s3] sm:$0xff]
    %v542 = vld [vmem:[%s3 + $0x8] sm:$0xff]
    %v543 = vld [vmem:[%s3 + $0x10] sm:$0xff]
    %v544 = vld [vmem:[%s3 + $0x18] sm:$0xff]
    %v545 = vld [vmem:[%s3 + $0x20] sm:$0xff]
    %v546 = vld [vmem:[%s3 + $0x28] sm:$0xff]
    %v547 = vld [vmem:[%s3 + $0x30] sm:$0xff]
    %v548 = vld [vmem:[%s3 + $0x38] sm:$0xff]
    %v549 = vld [vmem:[%s3 + $0x40] sm:$0xff]
    %v550 = vld [vmem:[%s3 + $0x48] sm:$0xff]
    %v551 = vld [vmem:[%s3 + $0x50] sm:$0xff]
    %v552 = vld [vmem:[%s3 + $0x58] sm:$0xff]
    %v553 = vld [vmem:[%s3 + $0x60] sm:$0xff]
    %v554 = vld [vmem:[%s3 + $0x68] sm:$0xff]
    %v555 = vld [vmem:[%s3 + $0x70] sm:$0xff]
    %v556 = vld [vmem:[%s3 + $0x78] sm:$0xff]
    %v557 = vadd.f32 %v479, %v541
    %v558 = vadd.f32 %v482, %v542
    %v559 = vadd.f32 %v487, %v543
    %v560 = vadd.f32 %v490, %v544
    %v561 = vadd.f32 %v495, %v545
    %v562 = vadd.f32 %v498, %v546
    %v563 = vadd.f32 %v503, %v547
    %v564 = vadd.f32 %v506, %v548
    %v565 = vadd.f32 %v511, %v549
    %v566 = vadd.f32 %v514, %v550
    %v567 = vadd.f32 %v519, %v551
    %v568 = vadd.f32 %v522, %v552
    %v569 = vadd.f32 %v527, %v553
    %v570 = vadd.f32 %v530, %v554
    %v571 = vadd.f32 %v535, %v555
    %v572 = vadd.f32 %v538, %v556
    %v573 = vmax.f32 %v557, 0.0
    %v574 = vmax.f32 %v558, 0.0
    %v575 = vmax.f32 %v559, 0.0
    %v576 = vmax.f32 %v560, 0.0
    %v577 = vmax.f32 %v561, 0.0
    %v578 = vmax.f32 %v562, 0.0
    %v579 = vmax.f32 %v563, 0.0
    %v580 = vmax.f32 %v564, 0.0
    %v581 = vmax.f32 %v565, 0.0
    %v582 = vmax.f32 %v566, 0.0
    %v583 = vmax.f32 %v567, 0.0
    %v584 = vmax.f32 %v568, 0.0
    %v585 = vmax.f32 %v569, 0.0
    %v586 = vmax.f32 %v570, 0.0
    %v587 = vmax.f32 %v571, 0.0
    %v588 = vmax.f32 %v572, 0.0
    %589 = vst [vmem:[#allocation2] sm:$0xff] %v573
    %590 = vst [vmem:[#allocation2 + $0x8] sm:$0xff] %v574
    %591 = vst [vmem:[#allocation2 + $0x10] sm:$0xff] %v575
    %592 = vst [vmem:[#allocation2 + $0x18] sm:$0xff] %v576
    %593 = vst [vmem:[#allocation2 + $0x20] sm:$0xff] %v577
    %594 = vst [vmem:[#allocation2 + $0x28] sm:$0xff] %v578
    %595 = vst [vmem:[#allocation2 + $0x30] sm:$0xff] %v579
    %596 = vst [vmem:[#allocation2 + $0x38] sm:$0xff] %v580
    %597 = vst [vmem:[#allocation2 + $0x40] sm:$0xff] %v581
    %598 = vst [vmem:[#allocation2 + $0x48] sm:$0xff] %v582
    %599 = vst [vmem:[#allocation2 + $0x50] sm:$0xff] %v583
    %600 = vst [vmem:[#allocation2 + $0x58] sm:$0xff] %v584
    %601 = vst [vmem:[#allocation2 + $0x60] sm:$0xff] %v585
    %602 = vst [vmem:[#allocation2 + $0x68] sm:$0xff] %v586
    %603 = vst [vmem:[#allocation2 + $0x70] sm:$0xff] %v587
    %604 = vst [vmem:[#allocation2 + $0x78] sm:$0xff] %v588
    // Predicated region
    $region18: #{_lambda_.3} parent=1 // pred_check
      _
    $region19: #{_lambda_.3} parent=1 // pred_check_branch
      %606 = sbr.rel (0) target = $region21
    $region20: #{_lambda_.3} parent=1 // pred_region
      %s608 = ssub.s32 2048, 2048
      %609 = vsyncadd [#allocation3], %s608
      %s610 = sshll.u32 [#allocation2], 4
      %s611 = int_to_ptr.vmem [resolvable:$true] %s610
      %616 = dma.vmem_to_hbm [thread:$0]  %s611, 2048, %s4, [#allocation3], 128, 128, 8
    $region21: #{_lambda_.3} parent=1 // pred_fallthru
      _
    // Predicated region
    $region22: #{_lambda_.3} parent=1 // pred_check
      _
    $region23: #{_lambda_.3} parent=1 // pred_check_branch
      %618 = sbr.rel (0) target = $region25
    $region24: #{_lambda_.3} parent=1 // pred_region
      %619 = dma.done [#allocation3], 2048
    $region25: #{_lambda_.3} parent=1 // pred_fallthru
      _
    %620 = vsyncpa [#allocation3], 1

</llo_original>
